<compile_context>
chip_gen: v6e
topology: v6e:2x2x1
jax: 0.10.0
libtpu: 0.0.40
codegen_flags: <defaults>
</compile_context>

<pallas_src>
import functools

import jax
import jax.numpy as jnp
from jax import lax
from jax.experimental import pallas as pl
from jax.experimental.pallas import tpu as pltpu

# ---- module hyperparameters (from IMLLM.py) ----
n_embd = 64
num_heads = 4
head_size = n_embd // num_heads  # 16
# dropout = 0.2  -> identity at inference time (eval-mode semantics)


def _multihead_fused_kernel(x_ref, wqkv_ref, wproj_ref, bproj_ref, o_ref,
                            *, nh: int):
    # x_ref    : (1, T, C)       one batch element
    # wqkv_ref : (C, 3*C)        [q heads | k heads | v heads], each (C, nh*H)
    # wproj_ref: (C, C)          output projection (y = cat @ Wproj)
    # bproj_ref: (1, C)
    # o_ref    : (1, T, C)
    x = x_ref[0]                                   # (T, C)
    T = x.shape[0]
    C = wproj_ref.shape[0]
    H = C // nh
    scale = jnp.float32(float(C) ** -0.5)          # PyTorch scales by C (=n_embd)

    # One wide MXU pass for all heads' q, k, v.
    qkv = jnp.dot(x, wqkv_ref[...],
                  preferred_element_type=jnp.float32)       # (T, 3C), f32

    # Causal mask (shared by all heads).
    row = lax.broadcasted_iota(jnp.int32, (T, T), 0)
    col = lax.broadcasted_iota(jnp.int32, (T, T), 1)
    causal = col <= row

    mxu_dtype = x.dtype  # keep MXU operand dtype consistent with the inputs

    head_outs = []
    for h in range(nh):                                      # static unroll, nh=4
        q = qkv[:, h * H:(h + 1) * H]                        # (T, H)
        k = qkv[:, C + h * H: C + (h + 1) * H]               # (T, H)
        v = qkv[:, 2 * C + h * H: 2 * C + (h + 1) * H]       # (T, H)

        # q @ k^T without materializing the transpose.
        wei = lax.dot_general(
            q, k, dimension_numbers=(((1,), (1,)), ((), ())),
            preferred_element_type=jnp.float32) * scale      # (T, T), f32

        wei = jnp.where(causal, wei, -jnp.inf)

        # numerically-stable softmax in f32 (exact normalization).
        m = jnp.max(wei, axis=-1, keepdims=True)
        p = jnp.exp(wei - m)
        denom = jnp.sum(p, axis=-1, keepdims=True)
        wei = p / denom

        # attention dropout: identity in eval mode
        head_outs.append(
            jnp.dot(wei.astype(mxu_dtype), v.astype(mxu_dtype),
                    preferred_element_type=jnp.float32))     # (T, H)

    cat = jnp.concatenate(head_outs, axis=-1)                # (T, C)

    # Fused output projection + bias (output dropout: identity in eval mode).
    out = jnp.dot(cat.astype(wproj_ref.dtype), wproj_ref[...],
                  preferred_element_type=jnp.float32)
    out = out + bproj_ref[...].astype(jnp.float32)           # (1, C) broadcast
    o_ref[0] = out.astype(o_ref.dtype)


def multihead_forward(x, wq, wk, wv, w_proj, b_proj, *, mxu_dtype=None):
    """Fused MultiHead forward.

    x: (B, T, C); wq/wk/wv: (num_heads, C, head_size);
    w_proj: (C, C) laid out so y = x @ W (transpose of nn.Linear.weight);
    b_proj: (C,).
    mxu_dtype: optional cast for MXU operands (e.g. jnp.bfloat16 on v6e/v7x);
               accumulation and softmax stay f32.
    """
    B, T, C = x.shape
    nh, _, H = wq.shape
    assert nh * H == C

    # Pack per-head weights into one (C, 3*C) matrix:
    #   columns [0:C)      -> q for heads 0..nh-1 (each H wide)
    #   columns [C:2C)     -> k
    #   columns [2C:3C)    -> v
    def _pack(w):  # (nh, C, H) -> (C, nh*H)
        return jnp.transpose(w, (1, 0, 2)).reshape(C, nh * H)

    wqkv = jnp.concatenate([_pack(wq), _pack(wk), _pack(wv)], axis=1)  # (C, 3C)

    if mxu_dtype is not None:
        x_in = x.astype(mxu_dtype)
        wqkv_in = wqkv.astype(mxu_dtype)
        wproj_in = w_proj.astype(mxu_dtype)
    else:
        x_in, wqkv_in, wproj_in = x, wqkv, w_proj

    kernel = functools.partial(_multihead_fused_kernel, nh=nh)

    out = pl.pallas_call(
        kernel,
        out_shape=jax.ShapeDtypeStruct((B, T, C), jnp.float32),
        grid_spec=pltpu.PrefetchScalarGridSpec(
            num_scalar_prefetch=0,
            grid=(B,),
            in_specs=[
                pl.BlockSpec((1, T, C), lambda b: (b, 0, 0)),      # x slab
                pl.BlockSpec((C, 3 * C), lambda b: (0, 0)),        # Wqkv (const)
                pl.BlockSpec((C, C), lambda b: (0, 0)),            # Wproj (const)
                pl.BlockSpec((1, C), lambda b: (0, 0)),            # bias (const)
            ],
            out_specs=pl.BlockSpec((1, T, C), lambda b: (b, 0, 0)),
        ),
        compiler_params=pltpu.CompilerParams(
            dimension_semantics=("parallel",)),
    )(x_in, wqkv_in, wproj_in, b_proj.reshape(1, C))
    return out


def _reference(x, wq, wk, wv, w_proj, b_proj):
    # Full-precision reference (matches the PyTorch forward in eval mode).
    B, T, C = x.shape
    hp = lax.Precision.HIGHEST
    outs = []
    for h in range(wq.shape[0]):
        q = jnp.matmul(x, wq[h], precision=hp)
        k = jnp.matmul(x, wk[h], precision=hp)
        v = jnp.matmul(x, wv[h], precision=hp)
        wei = jnp.matmul(q, jnp.swapaxes(k, -2, -1), precision=hp) * C ** (-0.5)
        mask = jnp.tril(jnp.ones((T, T), dtype=bool))
        wei = jnp.where(mask, wei, -jnp.inf)
        wei = jax.nn.softmax(wei, axis=-1)
        outs.append(jnp.matmul(wei, v, precision=hp))
    cat = jnp.concatenate(outs, axis=-1)
    return jnp.matmul(cat, w_proj, precision=hp) + b_proj


if __name__ == "__main__":
    key = jax.random.PRNGKey(0)
    B, T = 2, 8   # T <= block_size (384)

    k_x, k_q, k_k, k_v, k_p, k_b = jax.random.split(key, 6)
    x = jax.random.normal(k_x, (B, T, n_embd), dtype=jnp.float32)

    # deterministic synthetic parameters (Linear weight layout chosen so that
    # y = x @ W, i.e. W is the transpose of PyTorch's nn.Linear.weight)
    scale = 1.0 / jnp.sqrt(n_embd)
    wq = jax.random.normal(k_q, (num_heads, n_embd, head_size), jnp.float32) * scale
    wk = jax.random.normal(k_k, (num_heads, n_embd, head_size), jnp.float32) * scale
    wv = jax.random.normal(k_v, (num_heads, n_embd, head_size), jnp.float32) * scale
    w_proj = jax.random.normal(k_p, (n_embd, n_embd), jnp.float32) * scale
    b_proj = jax.random.normal(k_b, (n_embd,), jnp.float32) * 0.01

    ref = _reference(x, wq, wk, wv, w_proj, b_proj)

    # f32 path (matches PyTorch semantics).
    out = multihead_forward(x, wq, wk, wv, w_proj, b_proj)
    out = jax.block_until_ready(out)
    assert out.shape == (B, T, n_embd)
    assert jnp.all(jnp.isfinite(out)), "non-finite values in f32 output"
    assert jnp.allclose(out, ref, atol=2e-2, rtol=2e-2), "f32 mismatch vs reference"

    # bf16 MXU-operand path (recommended on v6e/v7x); looser tolerance.
    out_bf16 = multihead_forward(x, wq, wk, wv, w_proj, b_proj,
                                 mxu_dtype=jnp.bfloat16)
    out_bf16 = jax.block_until_ready(out_bf16)
    assert jnp.all(jnp.isfinite(out_bf16)), "non-finite values in bf16 output"
    assert jnp.allclose(out_bf16, ref, atol=1e-1, rtol=1e-1), "bf16 mismatch vs reference"

    # TODO(synk): dropout (p=0.2) is identity here (eval-mode semantics); train-mode
    # stochastic dropout would use pltpu.prng_seed / pltpu.prng_random_bits.
    print("KERNEL_OK")
</pallas_src>

<mosaic_0001>
module attributes {stable_mosaic.version = 11 : i64} {
  func.func @_multihead_fused_kernel(%arg0: i32, %arg1: memref<1x8x64xf32, #tpu.memory_space<vmem>>, %arg2: memref<64x192xf32, #tpu.memory_space<vmem>>, %arg3: memref<64x64xf32, #tpu.memory_space<vmem>>, %arg4: memref<1x64xf32, #tpu.memory_space<vmem>>, %arg5: memref<1x8x64xf32, #tpu.memory_space<vmem>>) attributes {dimension_semantics = [#tpu.dimension_semantics<parallel>], iteration_bounds = array<i64: 2>, scalar_prefetch = 0 : i64, scratch_operands = 0 : i64, tpu.core_type = #tpu.core_type<tc>, window_params = [{transform_indices = @transform_0, window_bounds = array<i64: 1, 8, 64>}, {pipeline_mode = #tpu.pipeline_mode<synchronous>, transform_indices = @transform_1, window_bounds = array<i64: 64, 192>}, {pipeline_mode = #tpu.pipeline_mode<synchronous>, transform_indices = @transform_2, window_bounds = array<i64: 64, 64>}, {pipeline_mode = #tpu.pipeline_mode<synchronous>, transform_indices = @transform_3, window_bounds = array<i64: 1, 64>}, {transform_indices = @transform_4, window_bounds = array<i64: 1, 8, 64>}]} {
    %c0 = arith.constant 0 : index
    %c0_0 = arith.constant 0 : index
    %c0_1 = arith.constant 0 : index
    %0 = vector.load %arg1[%c0, %c0_0, %c0_1] : memref<1x8x64xf32, #tpu.memory_space<vmem>>, vector<1x8x64xf32>
    %1 = vector.shape_cast %0 : vector<1x8x64xf32> to vector<8x64xf32>
    %c0_2 = arith.constant 0 : index
    %c0_3 = arith.constant 0 : index
    %2 = vector.load %arg2[%c0_2, %c0_3] : memref<64x192xf32, #tpu.memory_space<vmem>>, vector<64x192xf32>
    %cst = arith.constant dense<0.000000e+00> : vector<8x192xf32>
    %3 = tpu.matmul %1, %2, %cst {dimension_numbers = #tpu.dot_dimension_numbers<[1], [0], [0], [1], [0, 0, 1, 1], [], []>} : vector<8x64xf32>, vector<64x192xf32>, vector<8x192xf32> -> vector<8x192xf32>
    %4 = tpu.iota {dimensions = array<i32: 0>} : vector<8x8xi32>
    %5 = tpu.iota {dimensions = array<i32: 1>} : vector<8x8xi32>
    %6 = arith.cmpi sle, %5, %4 : vector<8x8xi32>
    %7 = vector.extract_strided_slice %3 {offsets = [0, 0], sizes = [8, 16], strides = [1, 1]} : vector<8x192xf32> to vector<8x16xf32>
    %8 = vector.extract_strided_slice %3 {offsets = [0, 64], sizes = [8, 16], strides = [1, 1]} : vector<8x192xf32> to vector<8x16xf32>
    %9 = vector.extract_strided_slice %3 {offsets = [0, 128], sizes = [8, 16], strides = [1, 1]} : vector<8x192xf32> to vector<8x16xf32>
    %cst_4 = arith.constant dense<0.000000e+00> : vector<8x8xf32>
    %10 = tpu.matmul %7, %8, %cst_4 {dimension_numbers = #tpu.dot_dimension_numbers<[1], [1], [0], [0], [0, 0, 1, 0], [], []>} : vector<8x16xf32>, vector<8x16xf32>, vector<8x8xf32> -> vector<8x8xf32>
    %cst_5 = arith.constant 1.250000e-01 : f32
    %11 = vector.broadcast %cst_5 : f32 to vector<8x8xf32>
    %12 = arith.mulf %10, %11 : vector<8x8xf32>
    %cst_6 = arith.constant 0xFF800000 : f32
    %13 = vector.broadcast %cst_6 : f32 to vector<8x8xf32>
    %14 = arith.select %6, %12, %13 : vector<8x8xi1>, vector<8x8xf32>
    %cst_7 = arith.constant dense<0xFF800000> : vector<8xf32>
    %15 = vector.multi_reduction <maximumf>, %14, %cst_7 [1] : vector<8x8xf32> to vector<8xf32>
    %16 = vector.shape_cast %15 : vector<8xf32> to vector<8x1xf32>
    %17 = vector.broadcast %16 : vector<8x1xf32> to vector<8x8xf32>
    %18 = arith.subf %14, %17 : vector<8x8xf32>
    %19 = math.exp %18 : vector<8x8xf32>
    %cst_8 = arith.constant dense<0.000000e+00> : vector<8xf32>
    %20 = vector.multi_reduction <add>, %19, %cst_8 [1] : vector<8x8xf32> to vector<8xf32>
    %21 = vector.shape_cast %20 : vector<8xf32> to vector<8x1xf32>
    %22 = vector.broadcast %21 : vector<8x1xf32> to vector<8x8xf32>
    %23 = arith.divf %19, %22 : vector<8x8xf32>
    %cst_9 = arith.constant dense<0.000000e+00> : vector<8x16xf32>
    %24 = tpu.matmul %23, %9, %cst_9 {dimension_numbers = #tpu.dot_dimension_numbers<[1], [0], [0], [1], [0, 0, 1, 1], [], []>} : vector<8x8xf32>, vector<8x16xf32>, vector<8x16xf32> -> vector<8x16xf32>
    %25 = vector.extract_strided_slice %3 {offsets = [0, 16], sizes = [8, 16], strides = [1, 1]} : vector<8x192xf32> to vector<8x16xf32>
    %26 = vector.extract_strided_slice %3 {offsets = [0, 80], sizes = [8, 16], strides = [1, 1]} : vector<8x192xf32> to vector<8x16xf32>
    %27 = vector.extract_strided_slice %3 {offsets = [0, 144], sizes = [8, 16], strides = [1, 1]} : vector<8x192xf32> to vector<8x16xf32>
    %cst_10 = arith.constant dense<0.000000e+00> : vector<8x8xf32>
    %28 = tpu.matmul %25, %26, %cst_10 {dimension_numbers = #tpu.dot_dimension_numbers<[1], [1], [0], [0], [0, 0, 1, 0], [], []>} : vector<8x16xf32>, vector<8x16xf32>, vector<8x8xf32> -> vector<8x8xf32>
    %cst_11 = arith.constant 1.250000e-01 : f32
    %29 = vector.broadcast %cst_11 : f32 to vector<8x8xf32>
    %30 = arith.mulf %28, %29 : vector<8x8xf32>
    %cst_12 = arith.constant 0xFF800000 : f32
    %31 = vector.broadcast %cst_12 : f32 to vector<8x8xf32>
    %32 = arith.select %6, %30, %31 : vector<8x8xi1>, vector<8x8xf32>
    %cst_13 = arith.constant dense<0xFF800000> : vector<8xf32>
    %33 = vector.multi_reduction <maximumf>, %32, %cst_13 [1] : vector<8x8xf32> to vector<8xf32>
    %34 = vector.shape_cast %33 : vector<8xf32> to vector<8x1xf32>
    %35 = vector.broadcast %34 : vector<8x1xf32> to vector<8x8xf32>
    %36 = arith.subf %32, %35 : vector<8x8xf32>
    %37 = math.exp %36 : vector<8x8xf32>
    %cst_14 = arith.constant dense<0.000000e+00> : vector<8xf32>
    %38 = vector.multi_reduction <add>, %37, %cst_14 [1] : vector<8x8xf32> to vector<8xf32>
    %39 = vector.shape_cast %38 : vector<8xf32> to vector<8x1xf32>
    %40 = vector.broadcast %39 : vector<8x1xf32> to vector<8x8xf32>
    %41 = arith.divf %37, %40 : vector<8x8xf32>
    %cst_15 = arith.constant dense<0.000000e+00> : vector<8x16xf32>
    %42 = tpu.matmul %41, %27, %cst_15 {dimension_numbers = #tpu.dot_dimension_numbers<[1], [0], [0], [1], [0, 0, 1, 1], [], []>} : vector<8x8xf32>, vector<8x16xf32>, vector<8x16xf32> -> vector<8x16xf32>
    %43 = vector.extract_strided_slice %3 {offsets = [0, 32], sizes = [8, 16], strides = [1, 1]} : vector<8x192xf32> to vector<8x16xf32>
    %44 = vector.extract_strided_slice %3 {offsets = [0, 96], sizes = [8, 16], strides = [1, 1]} : vector<8x192xf32> to vector<8x16xf32>
    %45 = vector.extract_strided_slice %3 {offsets = [0, 160], sizes = [8, 16], strides = [1, 1]} : vector<8x192xf32> to vector<8x16xf32>
    %cst_16 = arith.constant dense<0.000000e+00> : vector<8x8xf32>
    %46 = tpu.matmul %43, %44, %cst_16 {dimension_numbers = #tpu.dot_dimension_numbers<[1], [1], [0], [0], [0, 0, 1, 0], [], []>} : vector<8x16xf32>, vector<8x16xf32>, vector<8x8xf32> -> vector<8x8xf32>
    %cst_17 = arith.constant 1.250000e-01 : f32
    %47 = vector.broadcast %cst_17 : f32 to vector<8x8xf32>
    %48 = arith.mulf %46, %47 : vector<8x8xf32>
    %cst_18 = arith.constant 0xFF800000 : f32
    %49 = vector.broadcast %cst_18 : f32 to vector<8x8xf32>
    %50 = arith.select %6, %48, %49 : vector<8x8xi1>, vector<8x8xf32>
    %cst_19 = arith.constant dense<0xFF800000> : vector<8xf32>
    %51 = vector.multi_reduction <maximumf>, %50, %cst_19 [1] : vector<8x8xf32> to vector<8xf32>
    %52 = vector.shape_cast %51 : vector<8xf32> to vector<8x1xf32>
    %53 = vector.broadcast %52 : vector<8x1xf32> to vector<8x8xf32>
    %54 = arith.subf %50, %53 : vector<8x8xf32>
    %55 = math.exp %54 : vector<8x8xf32>
    %cst_20 = arith.constant dense<0.000000e+00> : vector<8xf32>
    %56 = vector.multi_reduction <add>, %55, %cst_20 [1] : vector<8x8xf32> to vector<8xf32>
    %57 = vector.shape_cast %56 : vector<8xf32> to vector<8x1xf32>
    %58 = vector.broadcast %57 : vector<8x1xf32> to vector<8x8xf32>
    %59 = arith.divf %55, %58 : vector<8x8xf32>
    %cst_21 = arith.constant dense<0.000000e+00> : vector<8x16xf32>
    %60 = tpu.matmul %59, %45, %cst_21 {dimension_numbers = #tpu.dot_dimension_numbers<[1], [0], [0], [1], [0, 0, 1, 1], [], []>} : vector<8x8xf32>, vector<8x16xf32>, vector<8x16xf32> -> vector<8x16xf32>
    %61 = vector.extract_strided_slice %3 {offsets = [0, 48], sizes = [8, 16], strides = [1, 1]} : vector<8x192xf32> to vector<8x16xf32>
    %62 = vector.extract_strided_slice %3 {offsets = [0, 112], sizes = [8, 16], strides = [1, 1]} : vector<8x192xf32> to vector<8x16xf32>
    %63 = vector.extract_strided_slice %3 {offsets = [0, 176], sizes = [8, 16], strides = [1, 1]} : vector<8x192xf32> to vector<8x16xf32>
    %cst_22 = arith.constant dense<0.000000e+00> : vector<8x8xf32>
    %64 = tpu.matmul %61, %62, %cst_22 {dimension_numbers = #tpu.dot_dimension_numbers<[1], [1], [0], [0], [0, 0, 1, 0], [], []>} : vector<8x16xf32>, vector<8x16xf32>, vector<8x8xf32> -> vector<8x8xf32>
    %cst_23 = arith.constant 1.250000e-01 : f32
    %65 = vector.broadcast %cst_23 : f32 to vector<8x8xf32>
    %66 = arith.mulf %64, %65 : vector<8x8xf32>
    %cst_24 = arith.constant 0xFF800000 : f32
    %67 = vector.broadcast %cst_24 : f32 to vector<8x8xf32>
    %68 = arith.select %6, %66, %67 : vector<8x8xi1>, vector<8x8xf32>
    %cst_25 = arith.constant dense<0xFF800000> : vector<8xf32>
    %69 = vector.multi_reduction <maximumf>, %68, %cst_25 [1] : vector<8x8xf32> to vector<8xf32>
    %70 = vector.shape_cast %69 : vector<8xf32> to vector<8x1xf32>
    %71 = vector.broadcast %70 : vector<8x1xf32> to vector<8x8xf32>
    %72 = arith.subf %68, %71 : vector<8x8xf32>
    %73 = math.exp %72 : vector<8x8xf32>
    %cst_26 = arith.constant dense<0.000000e+00> : vector<8xf32>
    %74 = vector.multi_reduction <add>, %73, %cst_26 [1] : vector<8x8xf32> to vector<8xf32>
    %75 = vector.shape_cast %74 : vector<8xf32> to vector<8x1xf32>
    %76 = vector.broadcast %75 : vector<8x1xf32> to vector<8x8xf32>
    %77 = arith.divf %73, %76 : vector<8x8xf32>
    %cst_27 = arith.constant dense<0.000000e+00> : vector<8x16xf32>
    %78 = tpu.matmul %77, %63, %cst_27 {dimension_numbers = #tpu.dot_dimension_numbers<[1], [0], [0], [1], [0, 0, 1, 1], [], []>} : vector<8x8xf32>, vector<8x16xf32>, vector<8x16xf32> -> vector<8x16xf32>
    %79 = tpu.concatenate %24, %42, %60, %78 in 1 : vector<8x16xf32>, vector<8x16xf32>, vector<8x16xf32>, vector<8x16xf32> -> vector<8x64xf32>
    %c0_28 = arith.constant 0 : index
    %c0_29 = arith.constant 0 : index
    %80 = vector.load %arg3[%c0_28, %c0_29] : memref<64x64xf32, #tpu.memory_space<vmem>>, vector<64x64xf32>
    %cst_30 = arith.constant dense<0.000000e+00> : vector<8x64xf32>
    %81 = tpu.matmul %79, %80, %cst_30 {dimension_numbers = #tpu.dot_dimension_numbers<[1], [0], [0], [1], [0, 0, 1, 1], [], []>} : vector<8x64xf32>, vector<64x64xf32>, vector<8x64xf32> -> vector<8x64xf32>
    %c0_31 = arith.constant 0 : index
    %c0_32 = arith.constant 0 : index
    %82 = vector.load %arg4[%c0_31, %c0_32] : memref<1x64xf32, #tpu.memory_space<vmem>>, vector<1x64xf32>
    %83 = vector.broadcast %82 : vector<1x64xf32> to vector<8x64xf32>
    %84 = arith.addf %81, %83 : vector<8x64xf32>
    %c0_33 = arith.constant 0 : index
    %c0_34 = arith.constant 0 : index
    %c0_35 = arith.constant 0 : index
    %85 = vector.load %arg5[%c0_33, %c0_34, %c0_35] : memref<1x8x64xf32, #tpu.memory_space<vmem>>, vector<1x8x64xf32>
    %86 = vector.shape_cast %85 : vector<1x8x64xf32> to vector<8x64xf32>
    %87 = vector.shape_cast %84 : vector<8x64xf32> to vector<1x8x64xf32>
    tpu.vector_store %arg5[%c0_33, %c0_34, %c0_35], %87 {strides = array<i32>} : memref<1x8x64xf32, #tpu.memory_space<vmem>>, vector<1x8x64xf32>,
    return
  }
  func.func @transform_0(%arg0: i32) -> (i32, i32, i32) {
    %c0_i32 = arith.constant 0 : i32
    %c0_i32_0 = arith.constant 0 : i32
    %c0_i32_1 = arith.constant 0 : i32
    return %arg0, %c0_i32, %c0_i32_0 : i32, i32, i32
  }
  func.func @transform_1(%arg0: i32) -> (i32, i32) {
    %c0_i32 = arith.constant 0 : i32
    %c0_i32_0 = arith.constant 0 : i32
    %c0_i32_1 = arith.constant 0 : i32
    return %c0_i32, %c0_i32_0 : i32, i32
  }
  func.func @transform_2(%arg0: i32) -> (i32, i32) {
    %c0_i32 = arith.constant 0 : i32
    %c0_i32_0 = arith.constant 0 : i32
    %c0_i32_1 = arith.constant 0 : i32
    return %c0_i32, %c0_i32_0 : i32, i32
  }
  func.func @transform_3(%arg0: i32) -> (i32, i32) {
    %c0_i32 = arith.constant 0 : i32
    %c0_i32_0 = arith.constant 0 : i32
    %c0_i32_1 = arith.constant 0 : i32
    return %c0_i32, %c0_i32_0 : i32, i32
  }
  func.func @transform_4(%arg0: i32) -> (i32, i32, i32) {
    %c0_i32 = arith.constant 0 : i32
    %c0_i32_0 = arith.constant 0 : i32
    %c0_i32_1 = arith.constant 0 : i32
    return %arg0, %c0_i32, %c0_i32_0 : i32, i32, i32
  }
}

</mosaic_0001>

<llo_original>
// kernel: tpu_custom_call.1
$region0: #{tpu_custom_call.1}
  #allocation0 [shape = 'u32[]', space=smem, size = 0x4, offset = 0x4, fixed_abs, tag = 'smem constant byte address 0x4 - core index']
  #allocation1 [shape = 'u32[144,128]{1,0:T(1,128)}', space=vmem, size = 0x12000, scoped, tag = 'internal scratch']
  %s0 = inlined_call_operand.hbm [shape: f32[2,8,64], index: 0, kind: input, shape index: {}]
  %s1 = inlined_call_operand.hbm [shape: f32[64,192], index: 1, kind: input, shape index: {}]
  %s2 = inlined_call_operand.hbm [shape: f32[64,64], index: 2, kind: input, shape index: {}]
  %s3 = inlined_call_operand.vmem [shape: f32[1,64], index: 3, kind: input, shape index: {}]
  %s4 = inlined_call_operand.hbm [shape: f32[2,8,64], index: 4, kind: output, shape index: {}]
  %s5 = sld [smem:[#allocation0]]
  $region61: #{tpu_custom_call.1} parent=0
    _
  %s7 = ssub.s32 1, %s5
  %s8 = scalar_select 0, %s7, %s5
  $region1: #{tpu_custom_call.1} parent=0
    #allocation2 [shape = 'u8[8192]{0}', space=vmem, size = 0x2000, scoped, tag = 'input window, operand 0']
    #allocation3 [shape = 's32[2]{0}', space=sflag, size = 0x8, scoped, tag = 'scoped memory for tpu_custom_call.1']
    #allocation4 [shape = 's32[2]{0}', space=sflag, size = 0x8, scoped, tag = 'scoped memory for tpu_custom_call.1']
    #allocation5 [shape = 'u8[65536]{0}', space=vmem, size = 0x10000, scoped, tag = 'input window, operand 1, single buffered']
    #allocation6 [shape = 's32[1]{0}', space=sflag, size = 0x4, scoped, tag = 'scoped memory for tpu_custom_call.1']
    #allocation7 [shape = 'u8[32768]{0}', space=vmem, size = 0x8000, scoped, tag = 'input window, operand 2, single buffered']
    #allocation8 [shape = 'u8[8192]{0}', space=vmem, size = 0x2000, scoped, tag = 'output window, operand 0']
    %9 = vsyncpa [#allocation3], 0
    %s10 = scalar_lea.sflag [#allocation3], 1
    %11 = vsyncpa %s10, 0
    %12 = vsyncpa [#allocation6], 0
    %13 = vsyncpa [#allocation4], 0
    %s14 = scalar_lea.sflag [#allocation4], 1
    %15 = vsyncpa %s14, 0
    loop: start=0, step=1, limit=4
    $region2: #{tpu_custom_call.1} parent=1 // loop_pre_header
      _
    $region3: #{tpu_custom_call.1} parent=1 // loop_header
      %s17 = sphi 0, %s21
      %p18 = scmp.ge.s32.totalorder %s17, 4
      %s27 = sphi 0, %s29
      %s30 = sphi 0, %s27
      %s31 = sphi 0, %s30
      %s47 = sphi 0, %s31
      %s51 = sphi 0, %s51
      %s53 = sphi 0, %s51
      %s54 = sphi 0, %s53
      %s68 = sphi 0, %s54
      %s72 = sphi 0, %s72
      %s74 = sphi 0, %s72
      %s75 = sphi 0, %s74
      %s89 = sphi 0, %s75
      %s93 = sphi 0, %s93
      %s95 = sphi 0, %s93
      %s96 = sphi 0, %s95
      %s110 = sphi 0, %s96
      %s116 = sphi 0, %s118
      %s119 = sphi 0, %s116
      %s120 = sphi 0, %s119
      %s136 = sphi 0, %s120
    $region4: #{tpu_custom_call.1} parent=1 // loop_header_branch
      %20 = sbr.rel (%p18) target = $region8
    $region5: #{tpu_custom_call.1} parent=1 // loop_body
      %s22 = ssub.s32 %s17, 1
      %s23 = ssub.s32 %s17, 2
      %s24 = sadd.s32 %s17, 1
      %s25 = ssub.s32 %s17, %s24
      %p26 = scmp.eq.s32.totalorder %s25, 0
      %s28 = sadd.s32 %s27, 1
      %s29 = scalar_select %p26, %s27, %s28
      %p32 = pneg %p26
      %p33 = scmp.eq.s32.totalorder %s17, 1
      %p34 = por %p32, %p33
      %p35 = scmp.ne.s32.totalorder %s27, %s30
      %p36 = scmp.eq.s32.totalorder %s17, 0
      %p37 = por %p35, %p36
      %p38 = scmp.ne.s32.totalorder %s27, %s30
      %p39 = scmp.eq.s32.totalorder %s22, 1
      %p40 = por %p38, %p39
      %p41 = scmp.ne.s32.totalorder %s30, %s31
      %p42 = scmp.eq.s32.totalorder %s22, 0
      %p43 = por %p41, %p42
      %p44 = scmp.ne.s32.totalorder %s30, %s31
      %p45 = scmp.eq.s32.totalorder %s23, 1
      %p46 = por %p44, %p45
      %p48 = scmp.ne.s32.totalorder %s31, %s47
      %p49 = scmp.eq.s32.totalorder %s23, 0
      %p50 = por %p48, %p49
      %s52 = sadd.s32 %s51, 1
      %p55 = scmp.eq.s32.totalorder %s17, 1
      %p56 = scmp.ne.s32.totalorder %s51, %s53
      %p57 = scmp.eq.s32.totalorder %s17, 0
      %p58 = por %p56, %p57
      %p59 = scmp.ne.s32.totalorder %s51, %s53
      %p60 = scmp.eq.s32.totalorder %s22, 1
      %p61 = por %p59, %p60
      %p62 = scmp.ne.s32.totalorder %s53, %s54
      %p63 = scmp.eq.s32.totalorder %s22, 0
      %p64 = por %p62, %p63
      %p65 = scmp.ne.s32.totalorder %s53, %s54
      %p66 = scmp.eq.s32.totalorder %s23, 1
      %p67 = por %p65, %p66
      %p69 = scmp.ne.s32.totalorder %s54, %s68
      %p70 = scmp.eq.s32.totalorder %s23, 0
      %p71 = por %p69, %p70
      %s73 = sadd.s32 %s72, 1
      %p76 = scmp.eq.s32.totalorder %s17, 1
      %p77 = scmp.ne.s32.totalorder %s72, %s74
      %p78 = scmp.eq.s32.totalorder %s17, 0
      %p79 = por %p77, %p78
      %p80 = scmp.ne.s32.totalorder %s72, %s74
      %p81 = scmp.eq.s32.totalorder %s22, 1
      %p82 = por %p80, %p81
      %p83 = scmp.ne.s32.totalorder %s74, %s75
      %p84 = scmp.eq.s32.totalorder %s22, 0
      %p85 = por %p83, %p84
      %p86 = scmp.ne.s32.totalorder %s74, %s75
      %p87 = scmp.eq.s32.totalorder %s23, 1
      %p88 = por %p86, %p87
      %p90 = scmp.ne.s32.totalorder %s75, %s89
      %p91 = scmp.eq.s32.totalorder %s23, 0
      %p92 = por %p90, %p91
      %s94 = sadd.s32 %s93, 1
      %p97 = scmp.eq.s32.totalorder %s17, 1
      %p98 = scmp.ne.s32.totalorder %s93, %s95
      %p99 = scmp.eq.s32.totalorder %s17, 0
      %p100 = por %p98, %p99
      %p101 = scmp.ne.s32.totalorder %s93, %s95
      %p102 = scmp.eq.s32.totalorder %s22, 1
      %p103 = por %p101, %p102
      %p104 = scmp.ne.s32.totalorder %s95, %s96
      %p105 = scmp.eq.s32.totalorder %s22, 0
      %p106 = por %p104, %p105
      %p107 = scmp.ne.s32.totalorder %s95, %s96
      %p108 = scmp.eq.s32.totalorder %s23, 1
      %p109 = por %p107, %p108
      %p111 = scmp.ne.s32.totalorder %s96, %s110
      %p112 = scmp.eq.s32.totalorder %s23, 0
      %p113 = por %p111, %p112
      %s114 = ssub.s32 %s17, %s24
      %p115 = scmp.eq.s32.totalorder %s114, 0
      %s117 = sadd.s32 %s116, 1
      %s118 = scalar_select %p115, %s116, %s117
      %p121 = pneg %p115
      %p122 = scmp.eq.s32.totalorder %s17, 1
      %p123 = por %p121, %p122
      %p124 = scmp.ne.s32.totalorder %s116, %s119
      %p125 = scmp.eq.s32.totalorder %s17, 0
      %p126 = por %p124, %p125
      %p127 = scmp.ne.s32.totalorder %s116, %s119
      %p128 = scmp.eq.s32.totalorder %s22, 1
      %p129 = por %p127, %p128
      %p130 = scmp.ne.s32.totalorder %s119, %s120
      %p131 = scmp.eq.s32.totalorder %s22, 0
      %p132 = por %p130, %p131
      %p133 = scmp.ne.s32.totalorder %s119, %s120
      %p134 = scmp.eq.s32.totalorder %s23, 1
      %p135 = por %p133, %p134
      %p137 = scmp.ne.s32.totalorder %s120, %s136
      %p138 = scmp.eq.s32.totalorder %s23, 0
      %p139 = por %p137, %p138
      %p140 = scmp.le.s32.totalorder 1, %s17
      %p141 = scmp.lt.s32.totalorder %s17, 3
      %p142 = pnand %p140, %p141
      %p143 = pneg %p142
      // Predicated region
      $region9: #{tpu_custom_call.1} parent=5 // pred_check
        _
      $region10: #{tpu_custom_call.1} parent=5 // pred_check_branch
        %145 = sbr.rel (%p142) target = $region12
      $region11: #{tpu_custom_call.1} parent=5 // pred_region
        %s146 = ssub.s32 %s17, 1
        // Predicated region
        $region13: #{tpu_custom_call.1} parent=11 // pred_check
          %p147 = pneg %p64
        $region14: #{tpu_custom_call.1} parent=11 // pred_check_branch
          %149 = sbr.rel (%p147) target = $region16
        $region15: #{tpu_custom_call.1} parent=11 // pred_region
          %s151 = ssub.s32 2048, 2048
          %152 = vsyncadd [#allocation6], %s151
          %s153 = sshll.u32 [#allocation5], 4
          %s154 = int_to_ptr.vmem [resolvable:$true] %s153
          %159 = dma.hbm_to_vmem [thread:$0]  %s1, 2048, %s154, [#allocation6], 256, 256, 16
        $region16: #{tpu_custom_call.1} parent=11 // pred_fallthru
          _
        // Predicated region
        $region17: #{tpu_custom_call.1} parent=11 // pred_check
          %p160 = pneg %p85
        $region18: #{tpu_custom_call.1} parent=11 // pred_check_branch
          %162 = sbr.rel (%p160) target = $region20
        $region19: #{tpu_custom_call.1} parent=11 // pred_region
          %s164 = ssub.s32 1024, 1024
          %165 = vsyncadd [#allocation6], %s164
          %s166 = sshll.u32 [#allocation7], 4
          %s167 = int_to_ptr.vmem [resolvable:$true] %s166
          %172 = dma.hbm_to_vmem [thread:$0]  %s2, 1024, %s167, [#allocation6], 128, 128, 8
        $region20: #{tpu_custom_call.1} parent=11 // pred_fallthru
          _
        // Predicated region
        $region21: #{tpu_custom_call.1} parent=11 // pred_check
          %p173 = pneg %p106
        $region22: #{tpu_custom_call.1} parent=11 // pred_check_branch
          %175 = sbr.rel (%p173) target = $region24
        $region23: #{tpu_custom_call.1} parent=11 // pred_region
          _
        $region24: #{tpu_custom_call.1} parent=11 // pred_fallthru
          _
      $region12: #{tpu_custom_call.1} parent=5 // pred_fallthru
        _
      %p176 = scmp.lt.s32.totalorder %s17, 2
      // Predicated region
      $region25: #{tpu_custom_call.1} parent=5 // pred_check
        %p177 = pneg %p176
      $region26: #{tpu_custom_call.1} parent=5 // pred_check_branch
        %179 = sbr.rel (%p177) target = $region28
      $region27: #{tpu_custom_call.1} parent=5 // pred_region
        // Predicated region
        $region29: #{tpu_custom_call.1} parent=27 // pred_check
          %p180 = pneg %p37
        $region30: #{tpu_custom_call.1} parent=27 // pred_check_branch
          %182 = sbr.rel (%p180) target = $region32
        $region31: #{tpu_custom_call.1} parent=27 // pred_region
          %s183 = sand.u32 %s27, 1
          %s184 = scalar_lea.sflag [#allocation3], %s183
          %s185 = sand.u32 %s27, 1
          %s186 = smul.addr %s185, 8
          %s187 = scalar_lea.vmem [#allocation2], %s186
          %s189 = ssub.s32 128, 128
          %190 = vsyncadd %s184, %s189
          %s191 = smul.addr %s17, 128
          %s192 = scalar_lea.hbm %s0, %s191
          %s194 = sshll.u32 %s187, 4
          %s195 = int_to_ptr.vmem [resolvable:$true] %s194
          %197 = dma.hbm_to_vmem [thread:$0]  %s192, 128, %s195, %s184
        $region32: #{tpu_custom_call.1} parent=27 // pred_fallthru
          _
      $region28: #{tpu_custom_call.1} parent=5 // pred_fallthru
        _
      %p198 = scmp.le.s32.totalorder 1, %s17
      %p199 = scmp.lt.s32.totalorder %s17, 3
      %p200 = pnand %p198, %p199
      %p201 = pneg %p200
      // Predicated region
      $region33: #{tpu_custom_call.1} parent=5 // pred_check
        _
      $region34: #{tpu_custom_call.1} parent=5 // pred_check_branch
        %203 = sbr.rel (%p200) target = $region36
      $region35: #{tpu_custom_call.1} parent=5 // pred_region
        %s204 = ssub.s32 %s17, 1
        %s205 = sand.u32 %s30, 1
        %s206 = scalar_lea.sflag [#allocation3], %s205
        %s207 = sand.u32 %s30, 1
        %s208 = smul.addr %s207, 8
        %s209 = scalar_lea.vmem [#allocation2], %s208
        // Predicated region
        $region37: #{tpu_custom_call.1} parent=35 // pred_check
          %p210 = pneg %p43
        $region38: #{tpu_custom_call.1} parent=35 // pred_check_branch
          %212 = sbr.rel (%p210) target = $region40
        $region39: #{tpu_custom_call.1} parent=35 // pred_region
          %213 = dma.done %s206, 128
        $region40: #{tpu_custom_call.1} parent=35 // pred_fallthru
          _
        // Predicated region
        $region41: #{tpu_custom_call.1} parent=35 // pred_check
          %p214 = pneg %p64
        $region42: #{tpu_custom_call.1} parent=35 // pred_check_branch
          %216 = sbr.rel (%p214) target = $region44
        $region43: #{tpu_custom_call.1} parent=35 // pred_region
          %217 = dma.done [#allocation6], 2048
        $region44: #{tpu_custom_call.1} parent=35 // pred_fallthru
          _
        // Predicated region
        $region45: #{tpu_custom_call.1} parent=35 // pred_check
          %p218 = pneg %p85
        $region46: #{tpu_custom_call.1} parent=35 // pred_check_branch
          %220 = sbr.rel (%p218) target = $region48
        $region47: #{tpu_custom_call.1} parent=35 // pred_region
          %221 = dma.done [#allocation6], 1024
        $region48: #{tpu_custom_call.1} parent=35 // pred_fallthru
          _
        %s222 = sand.u32 %s30, 1
        %s223 = scalar_lea.sflag [#allocation3], %s222
        %s224 = sand.u32 %s30, 1
        %s225 = smul.addr %s224, 8
        %s226 = scalar_lea.vmem [#allocation2], %s225
        %p227 = pneg %p43
        %p228 = pneg %p40
        %p229 = pneg %p64
        %p230 = pneg %p61
        %p231 = pneg %p85
        %p232 = pneg %p82
        %p233 = pneg %p106
        %p234 = pneg %p103
        %p235 = pneg %p132
        %p236 = pneg %p129
        %s237 = sand.u32 %s119, 1
        %s238 = scalar_lea.sflag [#allocation4], %s237
        %s239 = sand.u32 %s119, 1
        %s240 = smul.addr %s239, 8
        %s241 = scalar_lea.vmem [#allocation8], %s240
        %v242 = vld [vmem:[%s209] sm:$0xff]
        %v243 = vld [vmem:[#allocation5] sm:$0xff]
        %v244 = vld [vmem:[#allocation5 + $0x8] sm:$0xff]
        %v245 = vld [vmem:[#allocation5 + $0x10] sm:$0xff]
        %v246 = vld [vmem:[#allocation5 + $0x18] sm:$0xff]
        %v247 = vld [vmem:[#allocation5 + $0x20] sm:$0xff]
        %v248 = vld [vmem:[#allocation5 + $0x28] sm:$0xff]
        %v249 = vld [vmem:[#allocation5 + $0x30] sm:$0xff]
        %v250 = vld [vmem:[#allocation5 + $0x38] sm:$0xff]
        %v251 = vld [vmem:[#allocation5 + $0x40] sm:$0xff]
        %v252 = vld [vmem:[#allocation5 + $0x48] sm:$0xff]
        %v253 = vld [vmem:[#allocation5 + $0x50] sm:$0xff]
        %v254 = vld [vmem:[#allocation5 + $0x58] sm:$0xff]
        %v255 = vld [vmem:[#allocation5 + $0x60] sm:$0xff]
        %v256 = vld [vmem:[#allocation5 + $0x68] sm:$0xff]
        %v257 = vld [vmem:[#allocation5 + $0x70] sm:$0xff]
        %v258 = vld [vmem:[#allocation5 + $0x78] sm:$0xff]
        %vm259 = vcmask 523264
        %v261 = vsel %vm259, %v242, 0
        %263 = vmatprep.subr.mxu0 0.0
        %264 = vmatpush1.msra.mxu0 0.0
        %265 = vmatprep.subr.mxu0 0.0
        %266 = vmatpush1.msra.mxu0 0.0
        %267 = vmatprep.subr.mxu0 0.0
        %268 = vmatpush1.msra.mxu0 0.0
        %269 = vmatprep.subr.mxu0 0.0
        %270 = vmatpush1.msra.mxu0 0.0
        %271 = vmatprep.subr.mxu0 0.0
        %272 = vmatpush1.msra.mxu0 0.0
        %273 = vmatprep.subr.mxu0 0.0
        %274 = vmatpush1.msra.mxu0 0.0
        %275 = vmatprep.subr.mxu0 0.0
        %276 = vmatpush1.msra.mxu0 0.0
        %277 = vmatprep.subr.mxu0 0.0
        %278 = vmatpush1.msra.mxu0 0.0
        %279 = vmatprep.subr.mxu0 %v258
        %280 = vmatpush1.msra.mxu0 %v257
        %281 = vmatprep.subr.mxu0 %v256
        %282 = vmatpush1.msra.mxu0 %v255
        %283 = vmatprep.subr.mxu0 %v254
        %284 = vmatpush1.msra.mxu0 %v253
        %285 = vmatprep.subr.mxu0 %v252
        %286 = vmatpush1.msra.mxu0 %v251
        %287 = vmatprep.subr.mxu0 %v250
        %288 = vmatpush1.msra.mxu0 %v249
        %289 = vmatprep.subr.mxu0 %v248
        %290 = vmatpush1.msra.mxu0 %v247
        %291 = vmatprep.subr.mxu0 %v246
        %292 = vmatpush1.msra.mxu0 %v245
        %293 = vmatprep.subr.mxu0 %v244
        %294 = vmatpush1.msra.mxu0 %v243
        %295 = vmatprep.subr.mxu0 0.0
        %296 = vmatpush2.msra.mxu0 0.0
        %297 = vmatprep.subr.mxu0 0.0
        %298 = vmatpush2.msra.mxu0 0.0
        %299 = vmatprep.subr.mxu0 0.0
        %300 = vmatpush2.msra.mxu0 0.0
        %301 = vmatprep.subr.mxu0 0.0
        %302 = vmatpush2.msra.mxu0 0.0
        %303 = vmatprep.subr.mxu0 0.0
        %304 = vmatpush2.msra.mxu0 0.0
        %305 = vmatprep.subr.mxu0 0.0
        %306 = vmatpush2.msra.mxu0 0.0
        %307 = vmatprep.subr.mxu0 0.0
        %308 = vmatpush2.msra.mxu0 0.0
        %309 = vmatprep.subr.mxu0 0.0
        %310 = vmatpush2.msra.mxu0 0.0
        %311 = vmatprep.subr.mxu0 0.0
        %312 = vmatpush2.msra.mxu0 0.0
        %313 = vmatprep.subr.mxu0 0.0
        %314 = vmatpush2.msra.mxu0 0.0
        %315 = vmatprep.subr.mxu0 0.0
        %316 = vmatpush2.msra.mxu0 0.0
        %317 = vmatprep.subr.mxu0 0.0
        %318 = vmatpush2.msra.mxu0 0.0
        %319 = vmatprep.subr.mxu0 0.0
        %320 = vmatpush2.msra.mxu0 0.0
        %321 = vmatprep.subr.mxu0 0.0
        %322 = vmatpush2.msra.mxu0 0.0
        %323 = vmatprep.subr.mxu0 0.0
        %324 = vmatpush2.msra.mxu0 0.0
        %325 = vmatprep.subr.mxu0 0.0
        %326 = vmatpush2.msra.mxu0 0.0
        %327 = vmatprep.mubr.f32.mxu0 0.0
        %328 = vmatmul.mubr.f32.gmra.mxu0 %v261
        %v329 = vpop.f32.mrf.mxu0
        %v330 = vadd.f32 0.0, %v329
        %v331 = vpop.f32.mrf.mxu0
        %v332 = vadd.f32 0.0, %v331
        %333 = vdwg.mxu0
        %v334 = vlaneseq
        %v335 = vshrl.u32 %v334, 7
        %v336 = vlaneseq
        %v337 = vand.u32 %v336, 127
        %vm338 = vcmp.le.s32.totalorder %v337, %v335
        %340 = vrot.lane.b32.xlu0 %v330, 64
        %v341 = vpop.permute.xlu0 %340
        %vm342 = vcmask 130048
        %v343 = vsel %vm342, %v330, 0
        %v345 = vsel %vm342, %v341, 0
        %347 = vmatprep.subr.mxu0 0.0
        %348 = vmatpush1.xpose.msra.mxu0 0.0
        %349 = vmatprep.subr.mxu0 0.0
        %350 = vmatpush1.xpose.msra.mxu0 0.0
        %351 = vmatprep.subr.mxu0 0.0
        %352 = vmatpush1.xpose.msra.mxu0 0.0
        %353 = vmatprep.subr.mxu0 0.0
        %354 = vmatpush1.xpose.msra.mxu0 0.0
        %355 = vmatprep.subr.mxu0 0.0
        %356 = vmatpush1.xpose.msra.mxu0 0.0
        %357 = vmatprep.subr.mxu0 0.0
        %358 = vmatpush1.xpose.msra.mxu0 0.0
        %359 = vmatprep.subr.mxu0 0.0
        %360 = vmatpush1.xpose.msra.mxu0 0.0
        %361 = vmatprep.subr.mxu0 0.0
        %362 = vmatpush1.xpose.msra.mxu0 0.0
        %363 = vmatprep.subr.mxu0 0.0
        %364 = vmatpush1.xpose.msra.mxu0 0.0
        %365 = vmatprep.subr.mxu0 0.0
        %366 = vmatpush1.xpose.msra.mxu0 0.0
        %367 = vmatprep.subr.mxu0 0.0
        %368 = vmatpush1.xpose.msra.mxu0 0.0
        %369 = vmatprep.subr.mxu0 0.0
        %370 = vmatpush1.xpose.msra.mxu0 0.0
        %371 = vmatprep.subr.mxu0 0.0
        %372 = vmatpush1.xpose.msra.mxu0 0.0
        %373 = vmatprep.subr.mxu0 0.0
        %374 = vmatpush1.xpose.msra.mxu0 0.0
        %375 = vmatprep.subr.mxu0 0.0
        %376 = vmatpush1.xpose.msra.mxu0 0.0
        %377 = vmatprep.subr.mxu0 0.0
        %378 = vmatpush1.xpose.msra.mxu0 %v345
        %379 = vmatprep.subr.mxu0 0.0
        %380 = vmatpush2.xpose.msra.mxu0 0.0
        %381 = vmatprep.subr.mxu0 0.0
        %382 = vmatpush2.xpose.msra.mxu0 0.0
        %383 = vmatprep.subr.mxu0 0.0
        %384 = vmatpush2.xpose.msra.mxu0 0.0
        %385 = vmatprep.subr.mxu0 0.0
        %386 = vmatpush2.xpose.msra.mxu0 0.0
        %387 = vmatprep.subr.mxu0 0.0
        %388 = vmatpush2.xpose.msra.mxu0 0.0
        %389 = vmatprep.subr.mxu0 0.0
        %390 = vmatpush2.xpose.msra.mxu0 0.0
        %391 = vmatprep.subr.mxu0 0.0
        %392 = vmatpush2.xpose.msra.mxu0 0.0
        %393 = vmatprep.subr.mxu0 0.0
        %394 = vmatpush2.xpose.msra.mxu0 0.0
        %395 = vmatprep.subr.mxu0 0.0
        %396 = vmatpush2.xpose.msra.mxu0 0.0
        %397 = vmatprep.subr.mxu0 0.0
        %398 = vmatpush2.xpose.msra.mxu0 0.0
        %399 = vmatprep.subr.mxu0 0.0
        %400 = vmatpush2.xpose.msra.mxu0 0.0
        %401 = vmatprep.subr.mxu0 0.0
        %402 = vmatpush2.xpose.msra.mxu0 0.0
        %403 = vmatprep.subr.mxu0 0.0
        %404 = vmatpush2.xpose.msra.mxu0 0.0
        %405 = vmatprep.subr.mxu0 0.0
        %406 = vmatpush2.xpose.msra.mxu0 0.0
        %407 = vmatprep.subr.mxu0 0.0
        %408 = vmatpush2.xpose.msra.mxu0 0.0
        %409 = vmatprep.subr.mxu0 0.0
        %410 = vmatpush2.xpose.msra.mxu0 0.0
        %411 = vmatprep.mubr.f32.mxu0 0.0
        %412 = vmatmul.mubr.f32.gmra.mxu0 %v343
        %v413 = vpop.f32.mrf.mxu0
        %v414 = vadd.f32 0.0, %v413
        %v415 = vpop.f32.mrf.mxu0
        %416 = vdwg.mxu0
        %v417 = vmul.f32 %v414, 0.125
        %v418 = vsel %vm338, %v417, -inf
        %vm419 = vcmask 64512
        %v420 = vsel %vm419, %v418, -inf
        %421 = vmax.xlane.f32.xlu0 %v420
        %v422 = vpop.xlane.xlu0 %421
        %v423 = vsub.f32 %v418, %v422
        %v424 = vmul.f32 %v423, 1.442695
        %v425 = vpow.pop %v424
        %v426 = vsel %vm419, %v425, 0.0
        %427 = vadd.xlane.f32.xlu0 %v426
        %v428 = vpop.xlane.xlu0 %427
        %v429 = vrcp.pop %v428
        %v430 = vmul.f32 %v425, %v429
        %v432 = vsel %vm419, %v430, 0
        %434 = vmatprep.subr.mxu0 0.0
        %435 = vmatpush1.msra.mxu0 0.0
        %436 = vmatprep.subr.mxu0 0.0
        %437 = vmatpush1.msra.mxu0 0.0
        %438 = vmatprep.subr.mxu0 0.0
        %439 = vmatpush1.msra.mxu0 0.0
        %440 = vmatprep.subr.mxu0 0.0
        %441 = vmatpush1.msra.mxu0 0.0
        %442 = vmatprep.subr.mxu0 0.0
        %443 = vmatpush1.msra.mxu0 0.0
        %444 = vmatprep.subr.mxu0 0.0
        %445 = vmatpush1.msra.mxu0 0.0
        %446 = vmatprep.subr.mxu0 0.0
        %447 = vmatpush1.msra.mxu0 0.0
        %448 = vmatprep.subr.mxu0 0.0
        %449 = vmatpush1.msra.mxu0 0.0
        %450 = vmatprep.subr.mxu0 0.0
        %451 = vmatpush1.msra.mxu0 0.0
        %452 = vmatprep.subr.mxu0 0.0
        %453 = vmatpush1.msra.mxu0 0.0
        %454 = vmatprep.subr.mxu0 0.0
        %455 = vmatpush1.msra.mxu0 0.0
        %456 = vmatprep.subr.mxu0 0.0
        %457 = vmatpush1.msra.mxu0 0.0
        %458 = vmatprep.subr.mxu0 0.0
        %459 = vmatpush1.msra.mxu0 0.0
        %460 = vmatprep.subr.mxu0 0.0
        %461 = vmatpush1.msra.mxu0 0.0
        %462 = vmatprep.subr.mxu0 0.0
        %463 = vmatpush1.msra.mxu0 0.0
        %464 = vmatprep.subr.mxu0 0.0
        %465 = vmatpush1.msra.mxu0 %v332
        %466 = vmatprep.subr.mxu0 0.0
        %467 = vmatpush2.msra.mxu0 0.0
        %468 = vmatprep.subr.mxu0 0.0
        %469 = vmatpush2.msra.mxu0 0.0
        %470 = vmatprep.subr.mxu0 0.0
        %471 = vmatpush2.msra.mxu0 0.0
        %472 = vmatprep.subr.mxu0 0.0
        %473 = vmatpush2.msra.mxu0 0.0
        %474 = vmatprep.subr.mxu0 0.0
        %475 = vmatpush2.msra.mxu0 0.0
        %476 = vmatprep.subr.mxu0 0.0
        %477 = vmatpush2.msra.mxu0 0.0
        %478 = vmatprep.subr.mxu0 0.0
        %479 = vmatpush2.msra.mxu0 0.0
        %480 = vmatprep.subr.mxu0 0.0
        %481 = vmatpush2.msra.mxu0 0.0
        %482 = vmatprep.subr.mxu0 0.0
        %483 = vmatpush2.msra.mxu0 0.0
        %484 = vmatprep.subr.mxu0 0.0
        %485 = vmatpush2.msra.mxu0 0.0
        %486 = vmatprep.subr.mxu0 0.0
        %487 = vmatpush2.msra.mxu0 0.0
        %488 = vmatprep.subr.mxu0 0.0
        %489 = vmatpush2.msra.mxu0 0.0
        %490 = vmatprep.subr.mxu0 0.0
        %491 = vmatpush2.msra.mxu0 0.0
        %492 = vmatprep.subr.mxu0 0.0
        %493 = vmatpush2.msra.mxu0 0.0
        %494 = vmatprep.subr.mxu0 0.0
        %495 = vmatpush2.msra.mxu0 0.0
        %496 = vmatprep.subr.mxu0 0.0
        %497 = vmatpush2.msra.mxu0 0.0
        %498 = vmatprep.mubr.f32.mxu0 0.0
        %499 = vmatmul.mubr.f32.gmra.mxu0 %v432
        %v500 = vpop.f32.mrf.mxu0
        %v501 = vadd.f32 0.0, %v500
        %v502 = vpop.f32.mrf.mxu0
        %503 = vdwg.mxu0
        %504 = vrot.lane.b32.xlu0 %v330, 112
        %v505 = vpop.permute.xlu0 %504
        %506 = vrot.lane.b32.xlu0 %v330, 48
        %v507 = vpop.permute.xlu0 %506
        %v508 = vsel %vm342, %v505, 0
        %v510 = vsel %vm342, %v507, 0
        %512 = vmatprep.subr.mxu0 0.0
        %513 = vmatpush1.xpose.msra.mxu0 0.0
        %514 = vmatprep.subr.mxu0 0.0
        %515 = vmatpush1.xpose.msra.mxu0 0.0
        %516 = vmatprep.subr.mxu0 0.0
        %517 = vmatpush1.xpose.msra.mxu0 0.0
        %518 = vmatprep.subr.mxu0 0.0
        %519 = vmatpush1.xpose.msra.mxu0 0.0
        %520 = vmatprep.subr.mxu0 0.0
        %521 = vmatpush1.xpose.msra.mxu0 0.0
        %522 = vmatprep.subr.mxu0 0.0
        %523 = vmatpush1.xpose.msra.mxu0 0.0
        %524 = vmatprep.subr.mxu0 0.0
        %525 = vmatpush1.xpose.msra.mxu0 0.0
        %526 = vmatprep.subr.mxu0 0.0
        %527 = vmatpush1.xpose.msra.mxu0 0.0
        %528 = vmatprep.subr.mxu0 0.0
        %529 = vmatpush1.xpose.msra.mxu0 0.0
        %530 = vmatprep.subr.mxu0 0.0
        %531 = vmatpush1.xpose.msra.mxu0 0.0
        %532 = vmatprep.subr.mxu0 0.0
        %533 = vmatpush1.xpose.msra.mxu0 0.0
        %534 = vmatprep.subr.mxu0 0.0
        %535 = vmatpush1.xpose.msra.mxu0 0.0
        %536 = vmatprep.subr.mxu0 0.0
        %537 = vmatpush1.xpose.msra.mxu0 0.0
        %538 = vmatprep.subr.mxu0 0.0
        %539 = vmatpush1.xpose.msra.mxu0 0.0
        %540 = vmatprep.subr.mxu0 0.0
        %541 = vmatpush1.xpose.msra.mxu0 0.0
        %542 = vmatprep.subr.mxu0 0.0
        %543 = vmatpush1.xpose.msra.mxu0 %v510
        %544 = vmatprep.subr.mxu0 0.0
        %545 = vmatpush2.xpose.msra.mxu0 0.0
        %546 = vmatprep.subr.mxu0 0.0
        %547 = vmatpush2.xpose.msra.mxu0 0.0
        %548 = vmatprep.subr.mxu0 0.0
        %549 = vmatpush2.xpose.msra.mxu0 0.0
        %550 = vmatprep.subr.mxu0 0.0
        %551 = vmatpush2.xpose.msra.mxu0 0.0
        %552 = vmatprep.subr.mxu0 0.0
        %553 = vmatpush2.xpose.msra.mxu0 0.0
        %554 = vmatprep.subr.mxu0 0.0
        %555 = vmatpush2.xpose.msra.mxu0 0.0
        %556 = vmatprep.subr.mxu0 0.0
        %557 = vmatpush2.xpose.msra.mxu0 0.0
        %558 = vmatprep.subr.mxu0 0.0
        %559 = vmatpush2.xpose.msra.mxu0 0.0
        %560 = vmatprep.subr.mxu0 0.0
        %561 = vmatpush2.xpose.msra.mxu0 0.0
        %562 = vmatprep.subr.mxu0 0.0
        %563 = vmatpush2.xpose.msra.mxu0 0.0
        %564 = vmatprep.subr.mxu0 0.0
        %565 = vmatpush2.xpose.msra.mxu0 0.0
        %566 = vmatprep.subr.mxu0 0.0
        %567 = vmatpush2.xpose.msra.mxu0 0.0
        %568 = vmatprep.subr.mxu0 0.0
        %569 = vmatpush2.xpose.msra.mxu0 0.0
        %570 = vmatprep.subr.mxu0 0.0
        %571 = vmatpush2.xpose.msra.mxu0 0.0
        %572 = vmatprep.subr.mxu0 0.0
        %573 = vmatpush2.xpose.msra.mxu0 0.0
        %574 = vmatprep.subr.mxu0 0.0
        %575 = vmatpush2.xpose.msra.mxu0 0.0
        %576 = vmatprep.mubr.f32.mxu0 0.0
        %577 = vmatmul.mubr.f32.gmra.mxu0 %v508
        %v578 = vpop.f32.mrf.mxu0
        %v579 = vadd.f32 0.0, %v578
        %v580 = vpop.f32.mrf.mxu0
        %581 = vdwg.mxu0
        %v582 = vmul.f32 %v579, 0.125
        %v583 = vsel %vm338, %v582, -inf
        %v584 = vsel %vm419, %v583, -inf
        %585 = vmax.xlane.f32.xlu0 %v584
        %v586 = vpop.xlane.xlu0 %585
        %v587 = vsub.f32 %v583, %v586
        %v588 = vmul.f32 %v587, 1.442695
        %v589 = vpow.pop %v588
        %v590 = vsel %vm419, %v589, 0.0
        %591 = vadd.xlane.f32.xlu0 %v590
        %v592 = vpop.xlane.xlu0 %591
        %v593 = vrcp.pop %v592
        %v594 = vmul.f32 %v589, %v593
        %596 = vrot.lane.b32.xlu0 %v332, 112
        %v597 = vpop.permute.xlu0 %596
        %v600 = vsel %vm419, %v594, 0
        %602 = vmatprep.subr.mxu0 0.0
        %603 = vmatpush1.msra.mxu0 0.0
        %604 = vmatprep.subr.mxu0 0.0
        %605 = vmatpush1.msra.mxu0 0.0
        %606 = vmatprep.subr.mxu0 0.0
        %607 = vmatpush1.msra.mxu0 0.0
        %608 = vmatprep.subr.mxu0 0.0
        %609 = vmatpush1.msra.mxu0 0.0
        %610 = vmatprep.subr.mxu0 0.0
        %611 = vmatpush1.msra.mxu0 0.0
        %612 = vmatprep.subr.mxu0 0.0
        %613 = vmatpush1.msra.mxu0 0.0
        %614 = vmatprep.subr.mxu0 0.0
        %615 = vmatpush1.msra.mxu0 0.0
        %616 = vmatprep.subr.mxu0 0.0
        %617 = vmatpush1.msra.mxu0 0.0
        %618 = vmatprep.subr.mxu0 0.0
        %619 = vmatpush1.msra.mxu0 0.0
        %620 = vmatprep.subr.mxu0 0.0
        %621 = vmatpush1.msra.mxu0 0.0
        %622 = vmatprep.subr.mxu0 0.0
        %623 = vmatpush1.msra.mxu0 0.0
        %624 = vmatprep.subr.mxu0 0.0
        %625 = vmatpush1.msra.mxu0 0.0
        %626 = vmatprep.subr.mxu0 0.0
        %627 = vmatpush1.msra.mxu0 0.0
        %628 = vmatprep.subr.mxu0 0.0
        %629 = vmatpush1.msra.mxu0 0.0
        %630 = vmatprep.subr.mxu0 0.0
        %631 = vmatpush1.msra.mxu0 0.0
        %632 = vmatprep.subr.mxu0 0.0
        %633 = vmatpush1.msra.mxu0 %v597
        %634 = vmatprep.subr.mxu0 0.0
        %635 = vmatpush2.msra.mxu0 0.0
        %636 = vmatprep.subr.mxu0 0.0
        %637 = vmatpush2.msra.mxu0 0.0
        %638 = vmatprep.subr.mxu0 0.0
        %639 = vmatpush2.msra.mxu0 0.0
        %640 = vmatprep.subr.mxu0 0.0
        %641 = vmatpush2.msra.mxu0 0.0
        %642 = vmatprep.subr.mxu0 0.0
        %643 = vmatpush2.msra.mxu0 0.0
        %644 = vmatprep.subr.mxu0 0.0
        %645 = vmatpush2.msra.mxu0 0.0
        %646 = vmatprep.subr.mxu0 0.0
        %647 = vmatpush2.msra.mxu0 0.0
        %648 = vmatprep.subr.mxu0 0.0
        %649 = vmatpush2.msra.mxu0 0.0
        %650 = vmatprep.subr.mxu0 0.0
        %651 = vmatpush2.msra.mxu0 0.0
        %652 = vmatprep.subr.mxu0 0.0
        %653 = vmatpush2.msra.mxu0 0.0
        %654 = vmatprep.subr.mxu0 0.0
        %655 = vmatpush2.msra.mxu0 0.0
        %656 = vmatprep.subr.mxu0 0.0
        %657 = vmatpush2.msra.mxu0 0.0
        %658 = vmatprep.subr.mxu0 0.0
        %659 = vmatpush2.msra.mxu0 0.0
        %660 = vmatprep.subr.mxu0 0.0
        %661 = vmatpush2.msra.mxu0 0.0
        %662 = vmatprep.subr.mxu0 0.0
        %663 = vmatpush2.msra.mxu0 0.0
        %664 = vmatprep.subr.mxu0 0.0
        %665 = vmatpush2.msra.mxu0 0.0
        %666 = vmatprep.mubr.f32.mxu0 0.0
        %667 = vmatmul.mubr.f32.gmra.mxu0 %v600
        %v668 = vpop.f32.mrf.mxu0
        %v669 = vadd.f32 0.0, %v668
        %v670 = vpop.f32.mrf.mxu0
        %671 = vdwg.mxu0
        %672 = vrot.lane.b32.xlu0 %v330, 96
        %v673 = vpop.permute.xlu0 %672
        %674 = vrot.lane.b32.xlu0 %v330, 32
        %v675 = vpop.permute.xlu0 %674
        %v676 = vsel %vm342, %v673, 0
        %v678 = vsel %vm342, %v675, 0
        %680 = vmatprep.subr.mxu0 0.0
        %681 = vmatpush1.xpose.msra.mxu0 0.0
        %682 = vmatprep.subr.mxu0 0.0
        %683 = vmatpush1.xpose.msra.mxu0 0.0
        %684 = vmatprep.subr.mxu0 0.0
        %685 = vmatpush1.xpose.msra.mxu0 0.0
        %686 = vmatprep.subr.mxu0 0.0
        %687 = vmatpush1.xpose.msra.mxu0 0.0
        %688 = vmatprep.subr.mxu0 0.0
        %689 = vmatpush1.xpose.msra.mxu0 0.0
        %690 = vmatprep.subr.mxu0 0.0
        %691 = vmatpush1.xpose.msra.mxu0 0.0
        %692 = vmatprep.subr.mxu0 0.0
        %693 = vmatpush1.xpose.msra.mxu0 0.0
        %694 = vmatprep.subr.mxu0 0.0
        %695 = vmatpush1.xpose.msra.mxu0 0.0
        %696 = vmatprep.subr.mxu0 0.0
        %697 = vmatpush1.xpose.msra.mxu0 0.0
        %698 = vmatprep.subr.mxu0 0.0
        %699 = vmatpush1.xpose.msra.mxu0 0.0
        %700 = vmatprep.subr.mxu0 0.0
        %701 = vmatpush1.xpose.msra.mxu0 0.0
        %702 = vmatprep.subr.mxu0 0.0
        %703 = vmatpush1.xpose.msra.mxu0 0.0
        %704 = vmatprep.subr.mxu0 0.0
        %705 = vmatpush1.xpose.msra.mxu0 0.0
        %706 = vmatprep.subr.mxu0 0.0
        %707 = vmatpush1.xpose.msra.mxu0 0.0
        %708 = vmatprep.subr.mxu0 0.0
        %709 = vmatpush1.xpose.msra.mxu0 0.0
        %710 = vmatprep.subr.mxu0 0.0
        %711 = vmatpush1.xpose.msra.mxu0 %v678
        %712 = vmatprep.subr.mxu0 0.0
        %713 = vmatpush2.xpose.msra.mxu0 0.0
        %714 = vmatprep.subr.mxu0 0.0
        %715 = vmatpush2.xpose.msra.mxu0 0.0
        %716 = vmatprep.subr.mxu0 0.0
        %717 = vmatpush2.xpose.msra.mxu0 0.0
        %718 = vmatprep.subr.mxu0 0.0
        %719 = vmatpush2.xpose.msra.mxu0 0.0
        %720 = vmatprep.subr.mxu0 0.0
        %721 = vmatpush2.xpose.msra.mxu0 0.0
        %722 = vmatprep.subr.mxu0 0.0
        %723 = vmatpush2.xpose.msra.mxu0 0.0
        %724 = vmatprep.subr.mxu0 0.0
        %725 = vmatpush2.xpose.msra.mxu0 0.0
        %726 = vmatprep.subr.mxu0 0.0
        %727 = vmatpush2.xpose.msra.mxu0 0.0
        %728 = vmatprep.subr.mxu0 0.0
        %729 = vmatpush2.xpose.msra.mxu0 0.0
        %730 = vmatprep.subr.mxu0 0.0
        %731 = vmatpush2.xpose.msra.mxu0 0.0
        %732 = vmatprep.subr.mxu0 0.0
        %733 = vmatpush2.xpose.msra.mxu0 0.0
        %734 = vmatprep.subr.mxu0 0.0
        %735 = vmatpush2.xpose.msra.mxu0 0.0
        %736 = vmatprep.subr.mxu0 0.0
        %737 = vmatpush2.xpose.msra.mxu0 0.0
        %738 = vmatprep.subr.mxu0 0.0
        %739 = vmatpush2.xpose.msra.mxu0 0.0
        %740 = vmatprep.subr.mxu0 0.0
        %741 = vmatpush2.xpose.msra.mxu0 0.0
        %742 = vmatprep.subr.mxu0 0.0
        %743 = vmatpush2.xpose.msra.mxu0 0.0
        %744 = vmatprep.mubr.f32.mxu0 0.0
        %745 = vmatmul.mubr.f32.gmra.mxu0 %v676
        %v746 = vpop.f32.mrf.mxu0
        %v747 = vadd.f32 0.0, %v746
        %v748 = vpop.f32.mrf.mxu0
        %749 = vdwg.mxu0
        %v750 = vmul.f32 %v747, 0.125
        %v751 = vsel %vm338, %v750, -inf
        %v752 = vsel %vm419, %v751, -inf
        %753 = vmax.xlane.f32.xlu0 %v752
        %v754 = vpop.xlane.xlu0 %753
        %v755 = vsub.f32 %v751, %v754
        %v756 = vmul.f32 %v755, 1.442695
        %v757 = vpow.pop %v756
        %v758 = vsel %vm419, %v757, 0.0
        %759 = vadd.xlane.f32.xlu0 %v758
        %v760 = vpop.xlane.xlu0 %759
        %v761 = vrcp.pop %v760
        %v762 = vmul.f32 %v757, %v761
        %763 = vrot.lane.b32.xlu0 %v332, 96
        %v764 = vpop.permute.xlu0 %763
        %v767 = vsel %vm419, %v762, 0
        %769 = vmatprep.subr.mxu0 0.0
        %770 = vmatpush1.msra.mxu0 0.0
        %771 = vmatprep.subr.mxu0 0.0
        %772 = vmatpush1.msra.mxu0 0.0
        %773 = vmatprep.subr.mxu0 0.0
        %774 = vmatpush1.msra.mxu0 0.0
        %775 = vmatprep.subr.mxu0 0.0
        %776 = vmatpush1.msra.mxu0 0.0
        %777 = vmatprep.subr.mxu0 0.0
        %778 = vmatpush1.msra.mxu0 0.0
        %779 = vmatprep.subr.mxu0 0.0
        %780 = vmatpush1.msra.mxu0 0.0
        %781 = vmatprep.subr.mxu0 0.0
        %782 = vmatpush1.msra.mxu0 0.0
        %783 = vmatprep.subr.mxu0 0.0
        %784 = vmatpush1.msra.mxu0 0.0
        %785 = vmatprep.subr.mxu0 0.0
        %786 = vmatpush1.msra.mxu0 0.0
        %787 = vmatprep.subr.mxu0 0.0
        %788 = vmatpush1.msra.mxu0 0.0
        %789 = vmatprep.subr.mxu0 0.0
        %790 = vmatpush1.msra.mxu0 0.0
        %791 = vmatprep.subr.mxu0 0.0
        %792 = vmatpush1.msra.mxu0 0.0
        %793 = vmatprep.subr.mxu0 0.0
        %794 = vmatpush1.msra.mxu0 0.0
        %795 = vmatprep.subr.mxu0 0.0
        %796 = vmatpush1.msra.mxu0 0.0
        %797 = vmatprep.subr.mxu0 0.0
        %798 = vmatpush1.msra.mxu0 0.0
        %799 = vmatprep.subr.mxu0 0.0
        %800 = vmatpush1.msra.mxu0 %v764
        %801 = vmatprep.subr.mxu0 0.0
        %802 = vmatpush2.msra.mxu0 0.0
        %803 = vmatprep.subr.mxu0 0.0
        %804 = vmatpush2.msra.mxu0 0.0
        %805 = vmatprep.subr.mxu0 0.0
        %806 = vmatpush2.msra.mxu0 0.0
        %807 = vmatprep.subr.mxu0 0.0
        %808 = vmatpush2.msra.mxu0 0.0
        %809 = vmatprep.subr.mxu0 0.0
        %810 = vmatpush2.msra.mxu0 0.0
        %811 = vmatprep.subr.mxu0 0.0
        %812 = vmatpush2.msra.mxu0 0.0
        %813 = vmatprep.subr.mxu0 0.0
        %814 = vmatpush2.msra.mxu0 0.0
        %815 = vmatprep.subr.mxu0 0.0
        %816 = vmatpush2.msra.mxu0 0.0
        %817 = vmatprep.subr.mxu0 0.0
        %818 = vmatpush2.msra.mxu0 0.0
        %819 = vmatprep.subr.mxu0 0.0
        %820 = vmatpush2.msra.mxu0 0.0
        %821 = vmatprep.subr.mxu0 0.0
        %822 = vmatpush2.msra.mxu0 0.0
        %823 = vmatprep.subr.mxu0 0.0
        %824 = vmatpush2.msra.mxu0 0.0
        %825 = vmatprep.subr.mxu0 0.0
        %826 = vmatpush2.msra.mxu0 0.0
        %827 = vmatprep.subr.mxu0 0.0
        %828 = vmatpush2.msra.mxu0 0.0
        %829 = vmatprep.subr.mxu0 0.0
        %830 = vmatpush2.msra.mxu0 0.0
        %831 = vmatprep.subr.mxu0 0.0
        %832 = vmatpush2.msra.mxu0 0.0
        %833 = vmatprep.mubr.f32.mxu0 0.0
        %834 = vmatmul.mubr.f32.gmra.mxu0 %v767
        %v835 = vpop.f32.mrf.mxu0
        %v836 = vadd.f32 0.0, %v835
        %v837 = vpop.f32.mrf.mxu0
        %838 = vdwg.mxu0
        %839 = vrot.lane.b32.xlu0 %v330, 80
        %v840 = vpop.permute.xlu0 %839
        %841 = vrot.lane.b32.xlu0 %v330, 16
        %v842 = vpop.permute.xlu0 %841
        %v843 = vsel %vm342, %v840, 0
        %v845 = vsel %vm342, %v842, 0
        %847 = vmatprep.subr.mxu0 0.0
        %848 = vmatpush1.xpose.msra.mxu0 0.0
        %849 = vmatprep.subr.mxu0 0.0
        %850 = vmatpush1.xpose.msra.mxu0 0.0
        %851 = vmatprep.subr.mxu0 0.0
        %852 = vmatpush1.xpose.msra.mxu0 0.0
        %853 = vmatprep.subr.mxu0 0.0
        %854 = vmatpush1.xpose.msra.mxu0 0.0
        %855 = vmatprep.subr.mxu0 0.0
        %856 = vmatpush1.xpose.msra.mxu0 0.0
        %857 = vmatprep.subr.mxu0 0.0
        %858 = vmatpush1.xpose.msra.mxu0 0.0
        %859 = vmatprep.subr.mxu0 0.0
        %860 = vmatpush1.xpose.msra.mxu0 0.0
        %861 = vmatprep.subr.mxu0 0.0
        %862 = vmatpush1.xpose.msra.mxu0 0.0
        %863 = vmatprep.subr.mxu0 0.0
        %864 = vmatpush1.xpose.msra.mxu0 0.0
        %865 = vmatprep.subr.mxu0 0.0
        %866 = vmatpush1.xpose.msra.mxu0 0.0
        %867 = vmatprep.subr.mxu0 0.0
        %868 = vmatpush1.xpose.msra.mxu0 0.0
        %869 = vmatprep.subr.mxu0 0.0
        %870 = vmatpush1.xpose.msra.mxu0 0.0
        %871 = vmatprep.subr.mxu0 0.0
        %872 = vmatpush1.xpose.msra.mxu0 0.0
        %873 = vmatprep.subr.mxu0 0.0
        %874 = vmatpush1.xpose.msra.mxu0 0.0
        %875 = vmatprep.subr.mxu0 0.0
        %876 = vmatpush1.xpose.msra.mxu0 0.0
        %877 = vmatprep.subr.mxu0 0.0
        %878 = vmatpush1.xpose.msra.mxu0 %v845
        %879 = vmatprep.subr.mxu0 0.0
        %880 = vmatpush2.xpose.msra.mxu0 0.0
        %881 = vmatprep.subr.mxu0 0.0
        %882 = vmatpush2.xpose.msra.mxu0 0.0
        %883 = vmatprep.subr.mxu0 0.0
        %884 = vmatpush2.xpose.msra.mxu0 0.0
        %885 = vmatprep.subr.mxu0 0.0
        %886 = vmatpush2.xpose.msra.mxu0 0.0
        %887 = vmatprep.subr.mxu0 0.0
        %888 = vmatpush2.xpose.msra.mxu0 0.0
        %889 = vmatprep.subr.mxu0 0.0
        %890 = vmatpush2.xpose.msra.mxu0 0.0
        %891 = vmatprep.subr.mxu0 0.0
        %892 = vmatpush2.xpose.msra.mxu0 0.0
        %893 = vmatprep.subr.mxu0 0.0
        %894 = vmatpush2.xpose.msra.mxu0 0.0
        %895 = vmatprep.subr.mxu0 0.0
        %896 = vmatpush2.xpose.msra.mxu0 0.0
        %897 = vmatprep.subr.mxu0 0.0
        %898 = vmatpush2.xpose.msra.mxu0 0.0
        %899 = vmatprep.subr.mxu0 0.0
        %900 = vmatpush2.xpose.msra.mxu0 0.0
        %901 = vmatprep.subr.mxu0 0.0
        %902 = vmatpush2.xpose.msra.mxu0 0.0
        %903 = vmatprep.subr.mxu0 0.0
        %904 = vmatpush2.xpose.msra.mxu0 0.0
        %905 = vmatprep.subr.mxu0 0.0
        %906 = vmatpush2.xpose.msra.mxu0 0.0
        %907 = vmatprep.subr.mxu0 0.0
        %908 = vmatpush2.xpose.msra.mxu0 0.0
        %909 = vmatprep.subr.mxu0 0.0
        %910 = vmatpush2.xpose.msra.mxu0 0.0
        %911 = vmatprep.mubr.f32.mxu0 0.0
        %912 = vmatmul.mubr.f32.gmra.mxu0 %v843
        %v913 = vpop.f32.mrf.mxu0
        %v914 = vadd.f32 0.0, %v913
        %v915 = vpop.f32.mrf.mxu0
        %916 = vdwg.mxu0
        %v917 = vmul.f32 %v914, 0.125
        %v918 = vsel %vm338, %v917, -inf
        %v919 = vsel %vm419, %v918, -inf
        %920 = vmax.xlane.f32.xlu0 %v919
        %v921 = vpop.xlane.xlu0 %920
        %v922 = vsub.f32 %v918, %v921
        %v923 = vmul.f32 %v922, 1.442695
        %v924 = vpow.pop %v923
        %v925 = vsel %vm419, %v924, 0.0
        %926 = vadd.xlane.f32.xlu0 %v925
        %v927 = vpop.xlane.xlu0 %926
        %v928 = vrcp.pop %v927
        %v929 = vmul.f32 %v924, %v928
        %930 = vrot.lane.b32.xlu0 %v332, 80
        %v931 = vpop.permute.xlu0 %930
        %v934 = vsel %vm419, %v929, 0
        %936 = vmatprep.subr.mxu0 0.0
        %937 = vmatpush1.msra.mxu0 0.0
        %938 = vmatprep.subr.mxu0 0.0
        %939 = vmatpush1.msra.mxu0 0.0
        %940 = vmatprep.subr.mxu0 0.0
        %941 = vmatpush1.msra.mxu0 0.0
        %942 = vmatprep.subr.mxu0 0.0
        %943 = vmatpush1.msra.mxu0 0.0
        %944 = vmatprep.subr.mxu0 0.0
        %945 = vmatpush1.msra.mxu0 0.0
        %946 = vmatprep.subr.mxu0 0.0
        %947 = vmatpush1.msra.mxu0 0.0
        %948 = vmatprep.subr.mxu0 0.0
        %949 = vmatpush1.msra.mxu0 0.0
        %950 = vmatprep.subr.mxu0 0.0
        %951 = vmatpush1.msra.mxu0 0.0
        %952 = vmatprep.subr.mxu0 0.0
        %953 = vmatpush1.msra.mxu0 0.0
        %954 = vmatprep.subr.mxu0 0.0
        %955 = vmatpush1.msra.mxu0 0.0
        %956 = vmatprep.subr.mxu0 0.0
        %957 = vmatpush1.msra.mxu0 0.0
        %958 = vmatprep.subr.mxu0 0.0
        %959 = vmatpush1.msra.mxu0 0.0
        %960 = vmatprep.subr.mxu0 0.0
        %961 = vmatpush1.msra.mxu0 0.0
        %962 = vmatprep.subr.mxu0 0.0
        %963 = vmatpush1.msra.mxu0 0.0
        %964 = vmatprep.subr.mxu0 0.0
        %965 = vmatpush1.msra.mxu0 0.0
        %966 = vmatprep.subr.mxu0 0.0
        %967 = vmatpush1.msra.mxu0 %v931
        %968 = vmatprep.subr.mxu0 0.0
        %969 = vmatpush2.msra.mxu0 0.0
        %970 = vmatprep.subr.mxu0 0.0
        %971 = vmatpush2.msra.mxu0 0.0
        %972 = vmatprep.subr.mxu0 0.0
        %973 = vmatpush2.msra.mxu0 0.0
        %974 = vmatprep.subr.mxu0 0.0
        %975 = vmatpush2.msra.mxu0 0.0
        %976 = vmatprep.subr.mxu0 0.0
        %977 = vmatpush2.msra.mxu0 0.0
        %978 = vmatprep.subr.mxu0 0.0
        %979 = vmatpush2.msra.mxu0 0.0
        %980 = vmatprep.subr.mxu0 0.0
        %981 = vmatpush2.msra.mxu0 0.0
        %982 = vmatprep.subr.mxu0 0.0
        %983 = vmatpush2.msra.mxu0 0.0
        %984 = vmatprep.subr.mxu0 0.0
        %985 = vmatpush2.msra.mxu0 0.0
        %986 = vmatprep.subr.mxu0 0.0
        %987 = vmatpush2.msra.mxu0 0.0
        %988 = vmatprep.subr.mxu0 0.0
        %989 = vmatpush2.msra.mxu0 0.0
        %990 = vmatprep.subr.mxu0 0.0
        %991 = vmatpush2.msra.mxu0 0.0
        %992 = vmatprep.subr.mxu0 0.0
        %993 = vmatpush2.msra.mxu0 0.0
        %994 = vmatprep.subr.mxu0 0.0
        %995 = vmatpush2.msra.mxu0 0.0
        %996 = vmatprep.subr.mxu0 0.0
        %997 = vmatpush2.msra.mxu0 0.0
        %998 = vmatprep.subr.mxu0 0.0
        %999 = vmatpush2.msra.mxu0 0.0
        %1000 = vmatprep.mubr.f32.mxu0 0.0
        %1001 = vmatmul.mubr.f32.gmra.mxu0 %v934
        %v1002 = vpop.f32.mrf.mxu0
        %v1003 = vadd.f32 0.0, %v1002
        %v1004 = vpop.f32.mrf.mxu0
        %1005 = vdwg.mxu0
        %1007 = vrot.lane.b32.xlu0 %v669, 16
        %v1008 = vpop.permute.xlu0 %1007
        %1011 = vrot.lane.b32.xlu0 %v836, 32
        %v1012 = vpop.permute.xlu0 %1011
        %1015 = vrot.lane.b32.xlu0 %v1003, 48
        %v1016 = vpop.permute.xlu0 %1015
        %v1018 = vsel %vm342, %v501, %v1008
        %vm1019 = vcmask 261120
        %v1020 = vsel %vm1019, %v1018, %v1012
        %vm1021 = vcmask 392192
        %v1022 = vsel %vm1021, %v1020, %v1016
        %v1023 = vld [vmem:[#allocation7] sm:$0xff]
        %v1024 = vld [vmem:[#allocation7 + $0x8] sm:$0xff]
        %v1025 = vld [vmem:[#allocation7 + $0x10] sm:$0xff]
        %v1026 = vld [vmem:[#allocation7 + $0x18] sm:$0xff]
        %v1027 = vld [vmem:[#allocation7 + $0x20] sm:$0xff]
        %v1028 = vld [vmem:[#allocation7 + $0x28] sm:$0xff]
        %v1029 = vld [vmem:[#allocation7 + $0x30] sm:$0xff]
        %v1030 = vld [vmem:[#allocation7 + $0x38] sm:$0xff]
        %v1031 = vld [vmem:[%s3] sm:$0x1]
        %v1033 = vlaneseq
        %v1034 = vshrl.u32 %v1033, 7
        %v1035 = vsub.s32 0, %v1034
        %v1036 = vrot.slane %v1031, %v1035
        %v1039 = vsel %vm259, %v1022, 0
        %1041 = vmatprep.subr.mxu0 0.0
        %1042 = vmatpush1.msra.mxu0 0.0
        %1043 = vmatprep.subr.mxu0 0.0
        %1044 = vmatpush1.msra.mxu0 0.0
        %1045 = vmatprep.subr.mxu0 0.0
        %1046 = vmatpush1.msra.mxu0 0.0
        %1047 = vmatprep.subr.mxu0 0.0
        %1048 = vmatpush1.msra.mxu0 0.0
        %1049 = vmatprep.subr.mxu0 0.0
        %1050 = vmatpush1.msra.mxu0 0.0
        %1051 = vmatprep.subr.mxu0 0.0
        %1052 = vmatpush1.msra.mxu0 0.0
        %1053 = vmatprep.subr.mxu0 0.0
        %1054 = vmatpush1.msra.mxu0 0.0
        %1055 = vmatprep.subr.mxu0 0.0
        %1056 = vmatpush1.msra.mxu0 0.0
        %1057 = vmatprep.subr.mxu0 0.0
        %1058 = vmatpush1.msra.mxu0 %v1030
        %1059 = vmatprep.subr.mxu0 0.0
        %1060 = vmatpush1.msra.mxu0 %v1029
        %1061 = vmatprep.subr.mxu0 0.0
        %1062 = vmatpush1.msra.mxu0 %v1028
        %1063 = vmatprep.subr.mxu0 0.0
        %1064 = vmatpush1.msra.mxu0 %v1027
        %1065 = vmatprep.subr.mxu0 0.0
        %1066 = vmatpush1.msra.mxu0 %v1026
        %1067 = vmatprep.subr.mxu0 0.0
        %1068 = vmatpush1.msra.mxu0 %v1025
        %1069 = vmatprep.subr.mxu0 0.0
        %1070 = vmatpush1.msra.mxu0 %v1024
        %1071 = vmatprep.subr.mxu0 0.0
        %1072 = vmatpush1.msra.mxu0 %v1023
        %1073 = vmatprep.subr.mxu0 0.0
        %1074 = vmatpush2.msra.mxu0 0.0
        %1075 = vmatprep.subr.mxu0 0.0
        %1076 = vmatpush2.msra.mxu0 0.0
        %1077 = vmatprep.subr.mxu0 0.0
        %1078 = vmatpush2.msra.mxu0 0.0
        %1079 = vmatprep.subr.mxu0 0.0
        %1080 = vmatpush2.msra.mxu0 0.0
        %1081 = vmatprep.subr.mxu0 0.0
        %1082 = vmatpush2.msra.mxu0 0.0
        %1083 = vmatprep.subr.mxu0 0.0
        %1084 = vmatpush2.msra.mxu0 0.0
        %1085 = vmatprep.subr.mxu0 0.0
        %1086 = vmatpush2.msra.mxu0 0.0
        %1087 = vmatprep.subr.mxu0 0.0
        %1088 = vmatpush2.msra.mxu0 0.0
        %1089 = vmatprep.subr.mxu0 0.0
        %1090 = vmatpush2.msra.mxu0 0.0
        %1091 = vmatprep.subr.mxu0 0.0
        %1092 = vmatpush2.msra.mxu0 0.0
        %1093 = vmatprep.subr.mxu0 0.0
        %1094 = vmatpush2.msra.mxu0 0.0
        %1095 = vmatprep.subr.mxu0 0.0
        %1096 = vmatpush2.msra.mxu0 0.0
        %1097 = vmatprep.subr.mxu0 0.0
        %1098 = vmatpush2.msra.mxu0 0.0
        %1099 = vmatprep.subr.mxu0 0.0
        %1100 = vmatpush2.msra.mxu0 0.0
        %1101 = vmatprep.subr.mxu0 0.0
        %1102 = vmatpush2.msra.mxu0 0.0
        %1103 = vmatprep.subr.mxu0 0.0
        %1104 = vmatpush2.msra.mxu0 0.0
        %1105 = vmatprep.mubr.f32.mxu0 0.0
        %1106 = vmatmul.mubr.f32.gmra.mxu0 %v1039
        %v1107 = vpop.f32.mrf.mxu0
        %v1108 = vadd.f32 %v1036, %v1107
        %v1109 = vpop.f32.mrf.mxu0
        %1110 = vdwg.mxu0
        %1111 = vst.msk [vmem:[%s241] sm:$0xff] %vm259, %v1108
        %s1112 = sand.u32 %s119, 1
        %s1113 = scalar_lea.sflag [#allocation4], %s1112
        %s1114 = sand.u32 %s119, 1
        %s1115 = smul.addr %s1114, 8
        %s1116 = scalar_lea.vmem [#allocation8], %s1115
        // Predicated region
        $region49: #{tpu_custom_call.1} parent=35 // pred_check
          %p1117 = pneg %p129
        $region50: #{tpu_custom_call.1} parent=35 // pred_check_branch
          %1119 = sbr.rel (%p1117) target = $region52
        $region51: #{tpu_custom_call.1} parent=35 // pred_region
          %s1121 = ssub.s32 128, 128
          %1122 = vsyncadd %s1113, %s1121
          %s1123 = smul.addr %s22, 128
          %s1124 = scalar_lea.hbm %s4, %s1123
          %s1126 = sshll.u32 %s1116, 4
          %s1127 = int_to_ptr.vmem [resolvable:$true] %s1126
          %1129 = dma.vmem_to_hbm [thread:$0]  %s1127, 128, %s1124, %s1113
        $region52: #{tpu_custom_call.1} parent=35 // pred_fallthru
          _
      $region36: #{tpu_custom_call.1} parent=5 // pred_fallthru
        _
      %p1130 = scmp.le.s32.totalorder 2, %s17
      // Predicated region
      $region53: #{tpu_custom_call.1} parent=5 // pred_check
        %p1131 = pneg %p1130
      $region54: #{tpu_custom_call.1} parent=5 // pred_check_branch
        %1133 = sbr.rel (%p1131) target = $region56
      $region55: #{tpu_custom_call.1} parent=5 // pred_region
        %s1134 = ssub.s32 %s17, 2
        // Predicated region
        $region57: #{tpu_custom_call.1} parent=55 // pred_check
          %p1135 = pneg %p135
        $region58: #{tpu_custom_call.1} parent=55 // pred_check_branch
          %1137 = sbr.rel (%p1135) target = $region60
        $region59: #{tpu_custom_call.1} parent=55 // pred_region
          %s1138 = sand.u32 %s120, 1
          %s1139 = scalar_lea.sflag [#allocation4], %s1138
          %s1140 = sand.u32 %s120, 1
          %s1141 = smul.addr %s1140, 8
          %s1142 = scalar_lea.vmem [#allocation8], %s1141
          %1143 = dma.done %s1139, 128
        $region60: #{tpu_custom_call.1} parent=55 // pred_fallthru
          _
      $region56: #{tpu_custom_call.1} parent=5 // pred_fallthru
        _
    $region6: #{tpu_custom_call.1} parent=1 // loop_footer
      %s21 = sadd.s32 1, %s17
    $region7: #{tpu_custom_call.1} parent=1 // loop_footer_branch
      %16 = sbr.rel target = $region3
    $region8: #{tpu_custom_call.1} parent=1 // loop_exit
      _
    %1144 = vsyncpa [#allocation3], 1
    %s1145 = scalar_lea.sflag [#allocation3], 1
    %1146 = vsyncpa %s1145, 1
    %1147 = vsyncpa [#allocation6], 1
    %1148 = vsyncpa [#allocation4], 1
    %s1149 = scalar_lea.sflag [#allocation4], 1
    %1150 = vsyncpa %s1149, 1

</llo_original>
